<compile_context>
chip_gen: v7x
topology: tpu7x:2x2x1
jax: 0.10.0
libtpu: 0.0.40
codegen_flags: <defaults>
</compile_context>

<pallas_src>
import functools

import jax
import jax.numpy as jnp
from jax.experimental import pallas as pl
from jax.experimental.pallas import tpu as pltpu


# Resident-table gate: 2x (pipeline buffers) of this plus output tiles stays
# well under the 32 MiB scoped VMEM we request, which is valid on v5e/v6e
# (128 MiB physical) and v7x (64 MiB physical).
_VMEM_TABLE_BYTES_MAX = 8 * 1024 * 1024
_GROUP_VMEM = 64      # max rows per grid step, VMEM-resident path
_GROUP_HBM = 64       # in-flight row DMAs per grid step, HBM fallback path
_SUBLANE = 8          # f32 sublane packing
_LANE = 128


def _round_up(x, m):
    return ((x + m - 1) // m) * m


# -----------------------------------------------------------------------------
# Primary kernel: table resident in VMEM, rows gathered with dynamic slices.
# -----------------------------------------------------------------------------
def _gather_vmem_kernel(ids_ref, emb_ref, out_ref, *, group):
    """ids_ref: SMEM (Bp,) i32 | emb_ref: VMEM (n_classes, Dp) | out_ref: (group, Dp)."""
    base = pl.program_id(0) * group
    for r in range(group):                       # static unroll; static store rows
        idx = ids_ref[base + r]                  # dynamic class id (SMEM scalar)
        out_ref[pl.ds(r, 1), :] = emb_ref[pl.ds(idx, 1), :]


# -----------------------------------------------------------------------------
# Fallback kernel: table stays in HBM; rows DMA'd straight into the out tile.
# -----------------------------------------------------------------------------
def _gather_hbm_kernel(ids_ref, emb_hbm, out_ref, sem, *, group):
    base = pl.program_id(0) * group
    copies = []
    for r in range(group):                       # issue every DMA first -> overlap
        cp = pltpu.make_async_copy(
            emb_hbm.at[pl.ds(ids_ref[base + r], 1), :],   # (1, Dp) HBM row
            out_ref.at[pl.ds(r, 1), :],                   # (1, Dp) out-tile row
            sem.at[r],
        )
        cp.start()
        copies.append(cp)
    for cp in copies:
        cp.wait()


def class_embed_lookup(ids, emb_table, *, force_hbm=False):
    """ids: (B,) int32 class ids; emb_table: (n_classes, Dp), Dp % 128 == 0.

    Returns (B, Dp) gathered rows (dtype of emb_table).
    """
    B = ids.shape[0]
    n_classes, Dp = emb_table.shape
    itemsize = jnp.dtype(emb_table.dtype).itemsize
    table_bytes = n_classes * Dp * itemsize
    use_vmem = (table_bytes <= _VMEM_TABLE_BYTES_MAX) and not force_hbm

    max_group = _GROUP_VMEM if use_vmem else _GROUP_HBM
    # Small B (common diffusion case): one sublane-dense group -> grid=(1,).
    group = max_group if B > max_group else _round_up(max(B, 1), _SUBLANE)
    Bp = _round_up(B, group)
    if Bp != B:
        # Pad ids with a valid class (row 0); padded rows are sliced off below.
        ids = jnp.concatenate([ids, jnp.zeros((Bp - B,), dtype=ids.dtype)])
    grid = (Bp // group,)

    cost = pl.CostEstimate(
        flops=0, transcendentals=0,
        bytes_accessed=Bp * Dp * itemsize * 2 + (table_bytes if use_vmem else 0))

    if use_vmem:
        out = pl.pallas_call(
            functools.partial(_gather_vmem_kernel, group=group),
            out_shape=jax.ShapeDtypeStruct((Bp, Dp), emb_table.dtype),
            grid_spec=pltpu.PrefetchScalarGridSpec(
                num_scalar_prefetch=1,           # ids -> SMEM scalars
                grid=grid,
                in_specs=[
                    # Constant block index: the whole table is DMA'd HBM->VMEM
                    # once and stays resident across all grid steps.
                    pl.BlockSpec((n_classes, Dp), lambda g, ids: (0, 0)),
                ],
                out_specs=pl.BlockSpec((group, Dp), lambda g, ids: (g, 0)),
            ),
            compiler_params=pltpu.CompilerParams(
                dimension_semantics=("arbitrary",),
                vmem_limit_bytes=32 * 1024 * 1024),
            cost_estimate=cost,
        )(ids, emb_table)
    else:
        out = pl.pallas_call(
            functools.partial(_gather_hbm_kernel, group=group),
            out_shape=jax.ShapeDtypeStruct((Bp, Dp), emb_table.dtype),
            grid_spec=pltpu.PrefetchScalarGridSpec(
                num_scalar_prefetch=1,
                grid=grid,
                in_specs=[pl.BlockSpec(memory_space=pl.ANY)],   # raw HBM table
                out_specs=pl.BlockSpec((group, Dp), lambda g, ids: (g, 0)),
                scratch_shapes=[pltpu.SemaphoreType.DMA((group,))],
            ),
            compiler_params=pltpu.CompilerParams(
                dimension_semantics=("arbitrary",)),
            cost_estimate=cost,
        )(ids, emb_table)
    return out[:B]


class ClassEmbedder:
    def __init__(self, embed_dim, n_classes=1000, key='class', ucg_rate=0.1,
                 param_rng=None):
        self.key = key
        self.n_classes = n_classes
        self.embed_dim = embed_dim
        self.ucg_rate = ucg_rate
        if param_rng is None:
            param_rng = jax.random.PRNGKey(0)
        # nn.Embedding default init: weight ~ N(0, 1), shape (n_classes, embed_dim)
        self.embedding = jax.random.normal(
            param_rng, (n_classes, embed_dim), dtype=jnp.float32)
        # Lane-dense storage: pad last dim to a multiple of 128 so kernel row
        # loads / output stores are unmasked; padding sliced off after gather.
        dp = _round_up(embed_dim, _LANE)
        if dp != embed_dim:
            self._emb_padded = jnp.pad(self.embedding,
                                       ((0, 0), (0, dp - embed_dim)))
        else:
            self._emb_padded = self.embedding

    def __call__(self, batch, key=None, disable_dropout=False, dropout_rng=None,
                 _force_hbm=False):
        if key is None:
            key = self.key
        c = batch[key].astype(jnp.int32)                    # (B,)
        if self.ucg_rate > 0.0 and not disable_dropout:
            if dropout_rng is None:                         # None rng must not crash
                dropout_rng = jax.random.PRNGKey(0)
            # mask = 1 - bernoulli(ucg_rate); dropped ids -> unconditional class
            drop = jax.random.bernoulli(dropout_rng, p=self.ucg_rate,
                                        shape=c.shape)
            c = jnp.where(drop, jnp.int32(self.n_classes - 1), c)
        # TODO(synk): ucg id rewrite could be folded into the scalar-prefetch
        # path; it is a few-byte scalar op so it stays in glue for clarity.
        emb = class_embed_lookup(c, self._emb_padded, force_hbm=_force_hbm)
        emb = emb[:, :self.embed_dim]                        # drop lane padding
        return emb[:, None, :]                               # (B, 1, embed_dim)

    def get_unconditional_conditioning(self, bs):
        uc = jnp.full((bs,), self.n_classes - 1, dtype=jnp.int32)
        return {self.key: uc}


if __name__ == "__main__":
    B = 8
    N_CLASSES = 16
    EMBED_DIM = 128

    root = jax.random.PRNGKey(0)
    k_param, k_ids, k_drop = jax.random.split(root, 3)

    module = ClassEmbedder(embed_dim=EMBED_DIM, n_classes=N_CLASSES,
                           ucg_rate=0.1, param_rng=k_param)

    class_ids = jax.random.randint(k_ids, (B,), 0, N_CLASSES, dtype=jnp.int32)
    batch = {"class": class_ids}

    # Primary (VMEM-resident table) path vs pure-JAX reference gather.
    out = jax.block_until_ready(module(batch, disable_dropout=True))
    ref = module.embedding[class_ids][:, None, :]
    assert out.shape == (B, 1, EMBED_DIM)
    assert jnp.allclose(out, ref), "VMEM-resident gather mismatch vs reference"

    # HBM row-gather fallback path (forced) must match too.
    out_hbm = jax.block_until_ready(
        module(batch, disable_dropout=True, _force_hbm=True))
    assert jnp.allclose(out_hbm, ref), "HBM fallback gather mismatch vs reference"

    # ucg-dropout path (id rewrite in glue, gather in the Pallas kernel).
    out_drop = jax.block_until_ready(module(batch, dropout_rng=k_drop))
    assert out_drop.shape == (B, 1, EMBED_DIM)

    # Dropout path with no rng supplied must not crash (PyTorch parity).
    out_norng = jax.block_until_ready(module(batch))
    assert out_norng.shape == (B, 1, EMBED_DIM)

    # Non-multiple-of-8 batch exercises the row-padding path.
    ids5 = class_ids[:5]
    out5 = jax.block_until_ready(module({"class": ids5}, disable_dropout=True))
    assert out5.shape == (5, 1, EMBED_DIM)
    assert jnp.allclose(out5, module.embedding[ids5][:, None, :])

    # Non-multiple-of-128 embed_dim exercises lane padding of the table.
    module96 = ClassEmbedder(embed_dim=96, n_classes=N_CLASSES, ucg_rate=0.0,
                             param_rng=k_param)
    out96 = jax.block_until_ready(module96(batch, disable_dropout=True))
    assert out96.shape == (B, 1, 96)
    assert jnp.allclose(out96, module96.embedding[class_ids][:, None, :])

    # Unconditional-conditioning path (all ids = n_classes - 1).
    uc_batch = module.get_unconditional_conditioning(B)
    out_uc = jax.block_until_ready(module(uc_batch, disable_dropout=True))
    assert jnp.allclose(
        out_uc, jnp.broadcast_to(module.embedding[N_CLASSES - 1],
                                 (B, EMBED_DIM))[:, None, :])

    print("KERNEL_OK")
</pallas_src>

<mosaic_0001>
module attributes {stable_mosaic.version = 11 : i64} {
  func.func @_gather_vmem_kernel(%arg0: i32, %arg1: memref<8xi32, #tpu.memory_space<smem>>, %arg2: memref<16x128xf32, #tpu.memory_space<vmem>>, %arg3: memref<8x128xf32, #tpu.memory_space<vmem>>) attributes {dimension_semantics = [#tpu.dimension_semantics<arbitrary>], iteration_bounds = array<i64: 1>, scalar_prefetch = 1 : i64, scratch_operands = 0 : i64, tpu.core_type = #tpu.core_type<tc>, window_params = [{pipeline_mode = #tpu.pipeline_mode<synchronous>, transform_indices = @transform_0, window_bounds = array<i64: 16, 128>}, {transform_indices = @transform_1, window_bounds = array<i64: 8, 128>}]} {
    %c8_i32 = arith.constant 8 : i32
    %0 = arith.muli %arg0, %c8_i32 : i32
    %c0_i32 = arith.constant 0 : i32
    %1 = arith.addi %0, %c0_i32 : i32
    %2 = arith.index_cast %1 : i32 to index
    %3 = memref.load %arg1[%2] : memref<8xi32, #tpu.memory_space<smem>>
    %4 = arith.index_cast %3 : i32 to index
    %c0 = arith.constant 0 : index
    %5 = vector.load %arg2[%4, %c0] : memref<16x128xf32, #tpu.memory_space<vmem>>, vector<1x128xf32>
    %c0_0 = arith.constant 0 : index
    %c0_1 = arith.constant 0 : index
    %6 = vector.load %arg3[%c0_0, %c0_1] : memref<8x128xf32, #tpu.memory_space<vmem>>, vector<1x128xf32>
    tpu.vector_store %arg3[%c0_0, %c0_1], %5 {strides = array<i32>} : memref<8x128xf32, #tpu.memory_space<vmem>>, vector<1x128xf32>,
    %c1_i32 = arith.constant 1 : i32
    %7 = arith.addi %0, %c1_i32 : i32
    %8 = arith.index_cast %7 : i32 to index
    %9 = memref.load %arg1[%8] : memref<8xi32, #tpu.memory_space<smem>>
    %10 = arith.index_cast %9 : i32 to index
    %c0_2 = arith.constant 0 : index
    %11 = vector.load %arg2[%10, %c0_2] : memref<16x128xf32, #tpu.memory_space<vmem>>, vector<1x128xf32>
    %c1 = arith.constant 1 : index
    %c0_3 = arith.constant 0 : index
    %12 = vector.load %arg3[%c1, %c0_3] : memref<8x128xf32, #tpu.memory_space<vmem>>, vector<1x128xf32>
    tpu.vector_store %arg3[%c1, %c0_3], %11 {strides = array<i32>} : memref<8x128xf32, #tpu.memory_space<vmem>>, vector<1x128xf32>,
    %c2_i32 = arith.constant 2 : i32
    %13 = arith.addi %0, %c2_i32 : i32
    %14 = arith.index_cast %13 : i32 to index
    %15 = memref.load %arg1[%14] : memref<8xi32, #tpu.memory_space<smem>>
    %16 = arith.index_cast %15 : i32 to index
    %c0_4 = arith.constant 0 : index
    %17 = vector.load %arg2[%16, %c0_4] : memref<16x128xf32, #tpu.memory_space<vmem>>, vector<1x128xf32>
    %c2 = arith.constant 2 : index
    %c0_5 = arith.constant 0 : index
    %18 = vector.load %arg3[%c2, %c0_5] : memref<8x128xf32, #tpu.memory_space<vmem>>, vector<1x128xf32>
    tpu.vector_store %arg3[%c2, %c0_5], %17 {strides = array<i32>} : memref<8x128xf32, #tpu.memory_space<vmem>>, vector<1x128xf32>,
    %c3_i32 = arith.constant 3 : i32
    %19 = arith.addi %0, %c3_i32 : i32
    %20 = arith.index_cast %19 : i32 to index
    %21 = memref.load %arg1[%20] : memref<8xi32, #tpu.memory_space<smem>>
    %22 = arith.index_cast %21 : i32 to index
    %c0_6 = arith.constant 0 : index
    %23 = vector.load %arg2[%22, %c0_6] : memref<16x128xf32, #tpu.memory_space<vmem>>, vector<1x128xf32>
    %c3 = arith.constant 3 : index
    %c0_7 = arith.constant 0 : index
    %24 = vector.load %arg3[%c3, %c0_7] : memref<8x128xf32, #tpu.memory_space<vmem>>, vector<1x128xf32>
    tpu.vector_store %arg3[%c3, %c0_7], %23 {strides = array<i32>} : memref<8x128xf32, #tpu.memory_space<vmem>>, vector<1x128xf32>,
    %c4_i32 = arith.constant 4 : i32
    %25 = arith.addi %0, %c4_i32 : i32
    %26 = arith.index_cast %25 : i32 to index
    %27 = memref.load %arg1[%26] : memref<8xi32, #tpu.memory_space<smem>>
    %28 = arith.index_cast %27 : i32 to index
    %c0_8 = arith.constant 0 : index
    %29 = vector.load %arg2[%28, %c0_8] : memref<16x128xf32, #tpu.memory_space<vmem>>, vector<1x128xf32>
    %c4 = arith.constant 4 : index
    %c0_9 = arith.constant 0 : index
    %30 = vector.load %arg3[%c4, %c0_9] : memref<8x128xf32, #tpu.memory_space<vmem>>, vector<1x128xf32>
    tpu.vector_store %arg3[%c4, %c0_9], %29 {strides = array<i32>} : memref<8x128xf32, #tpu.memory_space<vmem>>, vector<1x128xf32>,
    %c5_i32 = arith.constant 5 : i32
    %31 = arith.addi %0, %c5_i32 : i32
    %32 = arith.index_cast %31 : i32 to index
    %33 = memref.load %arg1[%32] : memref<8xi32, #tpu.memory_space<smem>>
    %34 = arith.index_cast %33 : i32 to index
    %c0_10 = arith.constant 0 : index
    %35 = vector.load %arg2[%34, %c0_10] : memref<16x128xf32, #tpu.memory_space<vmem>>, vector<1x128xf32>
    %c5 = arith.constant 5 : index
    %c0_11 = arith.constant 0 : index
    %36 = vector.load %arg3[%c5, %c0_11] : memref<8x128xf32, #tpu.memory_space<vmem>>, vector<1x128xf32>
    tpu.vector_store %arg3[%c5, %c0_11], %35 {strides = array<i32>} : memref<8x128xf32, #tpu.memory_space<vmem>>, vector<1x128xf32>,
    %c6_i32 = arith.constant 6 : i32
    %37 = arith.addi %0, %c6_i32 : i32
    %38 = arith.index_cast %37 : i32 to index
    %39 = memref.load %arg1[%38] : memref<8xi32, #tpu.memory_space<smem>>
    %40 = arith.index_cast %39 : i32 to index
    %c0_12 = arith.constant 0 : index
    %41 = vector.load %arg2[%40, %c0_12] : memref<16x128xf32, #tpu.memory_space<vmem>>, vector<1x128xf32>
    %c6 = arith.constant 6 : index
    %c0_13 = arith.constant 0 : index
    %42 = vector.load %arg3[%c6, %c0_13] : memref<8x128xf32, #tpu.memory_space<vmem>>, vector<1x128xf32>
    tpu.vector_store %arg3[%c6, %c0_13], %41 {strides = array<i32>} : memref<8x128xf32, #tpu.memory_space<vmem>>, vector<1x128xf32>,
    %c7_i32 = arith.constant 7 : i32
    %43 = arith.addi %0, %c7_i32 : i32
    %44 = arith.index_cast %43 : i32 to index
    %45 = memref.load %arg1[%44] : memref<8xi32, #tpu.memory_space<smem>>
    %46 = arith.index_cast %45 : i32 to index
    %c0_14 = arith.constant 0 : index
    %47 = vector.load %arg2[%46, %c0_14] : memref<16x128xf32, #tpu.memory_space<vmem>>, vector<1x128xf32>
    %c7 = arith.constant 7 : index
    %c0_15 = arith.constant 0 : index
    %48 = vector.load %arg3[%c7, %c0_15] : memref<8x128xf32, #tpu.memory_space<vmem>>, vector<1x128xf32>
    tpu.vector_store %arg3[%c7, %c0_15], %47 {strides = array<i32>} : memref<8x128xf32, #tpu.memory_space<vmem>>, vector<1x128xf32>,
    return
  }
  func.func @transform_0(%arg0: i32, %arg1: memref<8xi32, #tpu.memory_space<smem>>) -> (i32, i32) {
    %c0_i32 = arith.constant 0 : i32
    %c0_i32_0 = arith.constant 0 : i32
    %c0_i32_1 = arith.constant 0 : i32
    return %c0_i32, %c0_i32_0 : i32, i32
  }
  func.func @transform_1(%arg0: i32, %arg1: memref<8xi32, #tpu.memory_space<smem>>) -> (i32, i32) {
    %c0_i32 = arith.constant 0 : i32
    %c0_i32_0 = arith.constant 0 : i32
    return %arg0, %c0_i32 : i32, i32
  }
}

</mosaic_0001>

<llo_original>
// kernel: tpu_custom_call.1
$region0: #{tpu_custom_call.1}
  #allocation0 [shape = 'u32[]', space=smem, size = 0x4, offset = 0x4, fixed_abs, tag = 'smem constant byte address 0x4 - core index']
  #allocation1 [shape = 'u32[144,128]{1,0:T(1,128)}', space=vmem, size = 0x12000, scoped, tag = 'internal scratch']
  #allocation2 [shape = 's32[1]{0}', space=sflag, size = 0x4, scoped, tag = 'scoped memory for tpu_custom_call.1']
  #allocation3 [shape = 'u8[512]{0}', space=smem, size = 0x200, scoped, tag = 'prefetched SMEM operand 0']
  %s0 = inlined_call_operand.hbm [shape: s32[8], index: 0, kind: input, shape index: {}]
  %s1 = inlined_call_operand.hbm [shape: f32[16,128], index: 1, kind: input, shape index: {}]
  %s2 = inlined_call_operand.hbm [shape: f32[8,128], index: 2, kind: output, shape index: {}]
  %s3 = sld [smem:[#allocation0]]
  $region18: #{tpu_custom_call.1} parent=0
    _
  %s5 = ssub.s32 1, %s3
  %s6 = scalar_select 0, %s5, %s3
  %8 = dma.hbm_to_smem %s0, 16, [#allocation3], [#allocation2]
  %9 = dma.done [#allocation2], 16
  %10 = sfence
  $region1: #{tpu_custom_call.1} parent=0
    #allocation4 [shape = 'u8[8192]{0}', space=vmem, size = 0x2000, scoped, tag = 'input window, operand 1, single buffered']
    #allocation5 [shape = 's32[1]{0}', space=sflag, size = 0x4, scoped, tag = 'scoped memory for tpu_custom_call.1']
    #allocation6 [shape = 's32[1]{0}', space=sflag, size = 0x4, scoped, tag = 'scoped memory for tpu_custom_call.1']
    #allocation7 [shape = 'u8[4096]{0}', space=vmem, size = 0x1000, scoped, tag = 'output window, operand 0, single buffered']
    %11 = vsyncpa [#allocation5], 0
    %12 = vsyncpa [#allocation6], 0
    // Predicated region
    $region2: #{tpu_custom_call.1} parent=1 // pred_check
      _
    $region3: #{tpu_custom_call.1} parent=1 // pred_check_branch
      %14 = sbr.rel (0) target = $region5
    $region4: #{tpu_custom_call.1} parent=1 // pred_region
      %s16 = ssub.s32 256, 256
      %17 = vsyncadd [#allocation5], %s16
      %s18 = sshll.u32 [#allocation4], 4
      %s19 = int_to_ptr.vmem [resolvable:$true] %s18
      %24 = dma.hbm_to_vmem [thread:$0]  %s1, 256, %s19, [#allocation5], 128, 128, 8
    $region5: #{tpu_custom_call.1} parent=1 // pred_fallthru
      _
    // Predicated region
    $region6: #{tpu_custom_call.1} parent=1 // pred_check
      _
    $region7: #{tpu_custom_call.1} parent=1 // pred_check_branch
      %26 = sbr.rel (0) target = $region9
    $region8: #{tpu_custom_call.1} parent=1 // pred_region
      %27 = dma.done [#allocation5], 256
    $region9: #{tpu_custom_call.1} parent=1 // pred_fallthru
      _
    %s28 = smul.u32 0, 8
    %s29 = sld [smem:[#allocation3 + %s28]]
    %s30 = scalar_lea.vmem [#allocation4], %s29
    %v31 = vld [vmem:[%s30] sm:$0x1]
    %32 = vst [vmem:[#allocation7] sm:$0x1] %v31
    %s33 = sadd.s32 %s28, 1
    %s34 = sld [smem:[#allocation3 + %s33]]
    %s35 = scalar_lea.vmem [#allocation4], %s34
    %v36 = vld [vmem:[%s35] sm:$0x1]
    %37 = vst [vmem:[#allocation7 + $0x1] sm:$0x1] %v36
    %s38 = sadd.s32 %s28, 2
    %s39 = sld [smem:[#allocation3 + %s38]]
    %s40 = scalar_lea.vmem [#allocation4], %s39
    %v41 = vld [vmem:[%s40] sm:$0x1]
    %42 = vst [vmem:[#allocation7 + $0x2] sm:$0x1] %v41
    %s43 = sadd.s32 %s28, 3
    %s44 = sld [smem:[#allocation3 + %s43]]
    %s45 = scalar_lea.vmem [#allocation4], %s44
    %v46 = vld [vmem:[%s45] sm:$0x1]
    %47 = vst [vmem:[#allocation7 + $0x3] sm:$0x1] %v46
    %s48 = sadd.s32 %s28, 4
    %s49 = sld [smem:[#allocation3 + %s48]]
    %s50 = scalar_lea.vmem [#allocation4], %s49
    %v51 = vld [vmem:[%s50] sm:$0x1]
    %52 = vst [vmem:[#allocation7 + $0x4] sm:$0x1] %v51
    %s53 = sadd.s32 %s28, 5
    %s54 = sld [smem:[#allocation3 + %s53]]
    %s55 = scalar_lea.vmem [#allocation4], %s54
    %v56 = vld [vmem:[%s55] sm:$0x1]
    %57 = vst [vmem:[#allocation7 + $0x5] sm:$0x1] %v56
    %s58 = sadd.s32 %s28, 6
    %s59 = sld [smem:[#allocation3 + %s58]]
    %s60 = scalar_lea.vmem [#allocation4], %s59
    %v61 = vld [vmem:[%s60] sm:$0x1]
    %62 = vst [vmem:[#allocation7 + $0x6] sm:$0x1] %v61
    %s63 = sadd.s32 %s28, 7
    %s64 = sld [smem:[#allocation3 + %s63]]
    %s65 = scalar_lea.vmem [#allocation4], %s64
    %v66 = vld [vmem:[%s65] sm:$0x1]
    %67 = vst [vmem:[#allocation7 + $0x7] sm:$0x1] %v66
    // Predicated region
    $region10: #{tpu_custom_call.1} parent=1 // pred_check
      _
    $region11: #{tpu_custom_call.1} parent=1 // pred_check_branch
      %69 = sbr.rel (0) target = $region13
    $region12: #{tpu_custom_call.1} parent=1 // pred_region
      %s71 = ssub.s32 128, 128
      %72 = vsyncadd [#allocation6], %s71
      %s74 = sshll.u32 [#allocation7], 4
      %s75 = int_to_ptr.vmem [resolvable:$true] %s74
      %77 = dma.vmem_to_hbm [thread:$0]  %s75, 128, %s2, [#allocation6]
    $region13: #{tpu_custom_call.1} parent=1 // pred_fallthru
      _
    // Predicated region
    $region14: #{tpu_custom_call.1} parent=1 // pred_check
      _
    $region15: #{tpu_custom_call.1} parent=1 // pred_check_branch
      %79 = sbr.rel (0) target = $region17
    $region16: #{tpu_custom_call.1} parent=1 // pred_region
      %80 = dma.done [#allocation6], 128
    $region17: #{tpu_custom_call.1} parent=1 // pred_fallthru
      _
    %81 = vsyncpa [#allocation5], 1
    %82 = vsyncpa [#allocation6], 1

</llo_original>
